<compile_context>
chip_gen: v7x
topology: tpu7x:2x2x1
jax: 0.10.0
libtpu: 0.0.40
codegen_flags: <defaults>
</compile_context>

<pallas_src>
import functools

import jax
import jax.numpy as jnp
from jax.experimental import pallas as pl
from jax.experimental.pallas import tpu as pltpu


_VMEM_LIMIT = 48 * 1024 * 1024  # headroom below v7x's 64 MiB physical VMEM per TC


def _round_up(x, m):
    return ((x + m - 1) // m) * m


def _choose_tiles(n):
    """Node padding and (row, reduction) tile sizes.

    Large reduction tiles amortize per-grid-step overhead; the row (parallel) axis is
    kept at >= 2 tiles so both v7x TensorCores are busy even for small graphs.
    """
    if n <= 2048:
        n_pad = _round_up(max(n, 256), 256)
        tile_k = n_pad            # single reduction step for small/medium graphs
        tile_r = n_pad // 2       # 2 row tiles -> megacore sharding
    else:
        tile_r, tile_k = 512, 1024
        n_pad = _round_up(n, 1024)
    return n_pad, tile_r, tile_k


# ---------------------------------------------------------------------------
# Kernels
# ---------------------------------------------------------------------------

def dense_kernel(x_ref, w_ref, b_ref, h_ref):
    """One row tile of H = X @ W + b (f32 MXU accumulate), emitted as bf16."""
    h = jnp.dot(x_ref[...], w_ref[...], preferred_element_type=jnp.float32) + b_ref[...]
    h_ref[...] = h.astype(jnp.bfloat16)


def conv_kernel(adj_ref, h_ref, out_ref, acc_ref):
    """One row tile of relu(A @ H), accumulated over node (reduction) tiles.

    A arrives as int8 (0/1) and is upcast to bf16 after the DMA (halves the dominant
    HBM stream); H is already bf16; f32 MXU accumulation in a VMEM scratch.
    """
    k = pl.program_id(1)

    @pl.when(k == 0)
    def _():
        acc_ref[...] = jnp.zeros_like(acc_ref)

    # int8 0/1 -> bf16 is lossless; explicit f32 hop keeps the lowering simple.
    a = adj_ref[...].astype(jnp.float32).astype(jnp.bfloat16)
    acc_ref[...] += jnp.dot(a, h_ref[...], preferred_element_type=jnp.float32)

    @pl.when(k == pl.num_programs(1) - 1)
    def _():
        out_ref[...] = jnp.maximum(acc_ref[...], 0.0)


def readout_kernel(pool_ref, z_ref, w3_ref, b3_ref, w4_ref, b4_ref, out_ref, acc_ref):
    """Graph pooling (tiled one-hot matmul) + fc3/relu + fc4 + log_softmax."""
    k = pl.program_id(0)

    @pl.when(k == 0)
    def _():
        acc_ref[...] = jnp.zeros_like(acc_ref)

    # scatter_add_(0, idx, z) == pool @ z, accumulated over node tiles in f32.
    acc_ref[...] += jnp.dot(pool_ref[...], z_ref[...].astype(jnp.bfloat16),
                            preferred_element_type=jnp.float32)

    @pl.when(k == pl.num_programs(0) - 1)
    def _():
        pooled = acc_ref[...]
        h3 = jnp.maximum(
            jnp.dot(pooled, w3_ref[...], preferred_element_type=jnp.float32) + b3_ref[...],
            0.0)
        logits = jnp.dot(h3, w4_ref[...], preferred_element_type=jnp.float32) + b4_ref[...]
        # Numerically stable log_softmax over the lane-padded class dim; padded classes
        # carry a -1e30 f32 bias so exp() underflows to 0 and they do not perturb it.
        m = jnp.max(logits, axis=1, keepdims=True)
        shifted = logits - m
        lse = jnp.log(jnp.sum(jnp.exp(shifted), axis=1, keepdims=True))
        out_ref[...] = shifted - lse


# ---------------------------------------------------------------------------
# pallas_call wrappers
# ---------------------------------------------------------------------------

def _dense(x, wt, b, *, tile_r):
    n_pad, f_in = x.shape
    f_out = wt.shape[1]
    grid = (n_pad // tile_r,)

    flops = 2 * n_pad * f_in * f_out
    bytes_accessed = (x.size * int(x.dtype.itemsize) + wt.size * 4 + b.size * 4
                      + n_pad * f_out * 2)

    return pl.pallas_call(
        dense_kernel,
        out_shape=jax.ShapeDtypeStruct((n_pad, f_out), jnp.bfloat16),
        grid_spec=pltpu.PrefetchScalarGridSpec(
            num_scalar_prefetch=0,
            grid=grid,
            in_specs=[pl.BlockSpec((tile_r, f_in), lambda i: (i, 0)),
                      pl.BlockSpec((f_in, f_out), lambda i: (0, 0)),
                      pl.BlockSpec((1, f_out), lambda i: (0, 0))],
            out_specs=pl.BlockSpec((tile_r, f_out), lambda i: (i, 0))),
        compiler_params=pltpu.CompilerParams(
            dimension_semantics=("parallel",),
            vmem_limit_bytes=_VMEM_LIMIT),
        cost_estimate=pl.CostEstimate(flops=int(flops), transcendentals=0,
                                      bytes_accessed=int(bytes_accessed)),
    )(x, wt, b)


def _graph_conv(adj_i8, h_bf16, *, tile_r, tile_k):
    """relu(A @ H) with A streamed from HBM as int8; row-tiled, reduction-tiled."""
    n_pad = adj_i8.shape[0]
    f_out = h_bf16.shape[1]
    grid = (n_pad // tile_r, n_pad // tile_k)

    flops = 2 * n_pad * n_pad * f_out
    bytes_accessed = adj_i8.size + grid[0] * h_bf16.size * 2 + n_pad * f_out * 4

    return pl.pallas_call(
        conv_kernel,
        out_shape=jax.ShapeDtypeStruct((n_pad, f_out), jnp.float32),
        grid_spec=pltpu.PrefetchScalarGridSpec(
            num_scalar_prefetch=0,
            grid=grid,
            in_specs=[
                # adjacency is the critical stream: triple-buffer its DMA
                pl.BlockSpec((tile_r, tile_k), lambda i, k: (i, k),
                             pipeline_mode=pl.Buffered(3)),
                pl.BlockSpec((tile_k, f_out), lambda i, k: (k, 0)),
            ],
            out_specs=pl.BlockSpec((tile_r, f_out), lambda i, k: (i, 0)),
            scratch_shapes=[pltpu.VMEM((tile_r, f_out), jnp.float32)]),
        compiler_params=pltpu.CompilerParams(
            dimension_semantics=("parallel", "arbitrary"),
            vmem_limit_bytes=_VMEM_LIMIT),
        cost_estimate=pl.CostEstimate(flops=int(flops), transcendentals=0,
                                      bytes_accessed=int(bytes_accessed)),
    )(adj_i8, h_bf16)


def _readout(pool_bf16, z, w3t, b3, w4t, b4, *, tile_k):
    g_pad, n_pad = pool_bf16.shape
    h2 = z.shape[1]
    h3d = w3t.shape[1]
    c_pad = w4t.shape[1]
    grid = (n_pad // tile_k,)

    flops = 2 * (g_pad * n_pad * h2 + g_pad * h2 * h3d + g_pad * h3d * c_pad)
    bytes_accessed = (pool_bf16.size * 2 + z.size * 4
                      + (w3t.size + b3.size + w4t.size + b4.size) * 4
                      + g_pad * c_pad * 4)

    return pl.pallas_call(
        readout_kernel,
        out_shape=jax.ShapeDtypeStruct((g_pad, c_pad), jnp.float32),
        grid_spec=pltpu.PrefetchScalarGridSpec(
            num_scalar_prefetch=0,
            grid=grid,
            in_specs=[pl.BlockSpec((g_pad, tile_k), lambda k: (0, k)),
                      pl.BlockSpec((tile_k, h2), lambda k: (k, 0)),
                      pl.BlockSpec((h2, h3d), lambda k: (0, 0)),
                      pl.BlockSpec((1, h3d), lambda k: (0, 0)),
                      pl.BlockSpec((h3d, c_pad), lambda k: (0, 0)),
                      pl.BlockSpec((1, c_pad), lambda k: (0, 0))],
            out_specs=pl.BlockSpec((g_pad, c_pad), lambda k: (0, 0)),
            scratch_shapes=[pltpu.VMEM((g_pad, h2), jnp.float32)]),
        compiler_params=pltpu.CompilerParams(
            dimension_semantics=("arbitrary",),
            vmem_limit_bytes=_VMEM_LIMIT),
        cost_estimate=pl.CostEstimate(flops=int(flops),
                                      transcendentals=int(g_pad * (c_pad + 1)),
                                      bytes_accessed=int(bytes_accessed)),
    )(pool_bf16, z, w3t, b3, w4t, b4)


# ---------------------------------------------------------------------------
# Forward pass
# ---------------------------------------------------------------------------

def gnn_forward(x_in, adj, idx, params, n_graphs):
    """params: dict (w1,b1,...,w4,b4) with PyTorch Linear conventions (w is [out, in])."""
    N = x_in.shape[0]
    n_class = params["w4"].shape[0]
    h1, h2, h3 = params["w1"].shape[0], params["w2"].shape[0], params["w3"].shape[0]

    # --- node padding / tiling ------------------------------------------------------
    n_pad, tile_r, tile_k = _choose_tiles(N)
    if n_pad != N:
        adj = jnp.pad(adj, ((0, n_pad - N), (0, n_pad - N)))
        x_in = jnp.pad(x_in, ((0, n_pad - N), (0, 0)))
        idx = jnp.pad(idx, (0, n_pad - N), constant_values=-1)  # padded nodes -> no graph

    # 0/1 adjacency stored as int8 in HBM (lossless, halves the dominant HBM stream);
    # adj.T materialized once so the second conv streams contiguous rows.
    adj_i8 = adj.astype(jnp.int8)
    adj_t_i8 = adj_i8.T

    # scatter_add_(0, idx, z) expressed as an exact one-hot matmul (pool @ z), bf16 0/1.
    # TODO(synk): for sorted/contiguous idx, replace with a scalar-prefetched segment
    # row-sum to avoid materializing the (g_pad, N) pool matrix for very large N.
    g_pad = _round_up(max(n_graphs, 1), 8)
    pool = (idx[None, :] == jnp.arange(g_pad, dtype=idx.dtype)[:, None]).astype(jnp.bfloat16)

    # --- weight prep: pre-transpose to [in, out], pad feature dims to 128 lanes ------
    h1p, h2p, h3p = (_round_up(h, 128) for h in (h1, h2, h3))
    c_pad = _round_up(n_class, 128)

    w1t = jnp.pad(params["w1"].T, ((0, 0), (0, h1p - h1)))
    b1 = jnp.pad(params["b1"], (0, h1p - h1))[None, :]
    w2t = jnp.pad(params["w2"].T, ((0, h1p - h1), (0, h2p - h2)))
    b2 = jnp.pad(params["b2"], (0, h2p - h2))[None, :]
    w3t = jnp.pad(params["w3"].T, ((0, h2p - h2), (0, h3p - h3)))
    b3 = jnp.pad(params["b3"], (0, h3p - h3))[None, :]
    w4t = jnp.pad(params["w4"].T, ((0, h3p - h3), (0, c_pad - n_class)))
    b4 = jnp.pad(params["b4"], (0, c_pad - n_class), constant_values=-1e30)[None, :]

    # --- forward ----------------------------------------------------------------------
    h1a = _dense(x_in, w1t, b1, tile_r=tile_r)                      # fc1(x)      (bf16)
    z0 = _graph_conv(adj_i8, h1a, tile_r=tile_r, tile_k=tile_k)     # relu(A  @ fc1(x))
    h2a = _dense(z0, w2t, b2, tile_r=tile_r)                        # fc2(z0)     (bf16)
    z1 = _graph_conv(adj_t_i8, h2a, tile_r=tile_r, tile_k=tile_k)   # relu(A.T @ fc2(z0))
    out = _readout(pool, z1, w3t, b3, w4t, b4, tile_k=tile_k)       # pool+fc3+fc4+logsm
    return out[:n_graphs, :n_class]


def init_params(key, input_dim, h1, h2, h3, n_class):
    ks = jax.random.split(key, 8)

    def lin(kw, kb, fan_out, fan_in):
        bound = 1.0 / jnp.sqrt(fan_in)
        w = jax.random.uniform(kw, (fan_out, fan_in), jnp.float32, -bound, bound)
        b = jax.random.uniform(kb, (fan_out,), jnp.float32, -bound, bound)
        return w, b

    w1, b1 = lin(ks[0], ks[1], h1, input_dim)
    w2, b2 = lin(ks[2], ks[3], h2, h1)
    w3, b3 = lin(ks[4], ks[5], h3, h2)
    w4, b4 = lin(ks[6], ks[7], n_class, h3)
    return dict(w1=w1, b1=b1, w2=w2, b2=b2, w3=w3, b3=b3, w4=w4, b4=b4)


if __name__ == "__main__":
    key = jax.random.PRNGKey(0)
    k_x, k_a, k_p = jax.random.split(key, 3)

    N = 16            # total nodes across all graphs
    input_dim = 8
    h1, h2, h3 = 16, 16, 16
    n_class = 8
    n_graphs = 4      # == max(idx) + 1

    x_in = jax.random.normal(k_x, (N, input_dim), jnp.float32)
    adj = (jax.random.uniform(k_a, (N, N), jnp.float32) > 0.7).astype(jnp.float32)
    idx = jnp.repeat(jnp.arange(n_graphs, dtype=jnp.int32), N // n_graphs)

    params = init_params(k_p, input_dim, h1, h2, h3, n_class)

    out = gnn_forward(x_in, adj, idx, params, n_graphs)
    out = jax.block_until_ready(out)
    assert out.shape == (n_graphs, n_class)
    assert bool(jnp.all(jnp.isfinite(out)))
    print("KERNEL_OK")
</pallas_src>

<mosaic_0001>
module attributes {stable_mosaic.version = 11 : i64} {
  func.func @dense_kernel(%arg0: i32, %arg1: memref<128x8xf32, #tpu.memory_space<vmem>>, %arg2: memref<8x128xf32, #tpu.memory_space<vmem>>, %arg3: memref<1x128xf32, #tpu.memory_space<vmem>>, %arg4: memref<128x128xbf16, #tpu.memory_space<vmem>>) attributes {dimension_semantics = [#tpu.dimension_semantics<parallel>], iteration_bounds = array<i64: 2>, scalar_prefetch = 0 : i64, scratch_operands = 0 : i64, tpu.core_type = #tpu.core_type<tc>, window_params = [{transform_indices = @transform_0, window_bounds = array<i64: 128, 8>}, {pipeline_mode = #tpu.pipeline_mode<synchronous>, transform_indices = @transform_1, window_bounds = array<i64: 8, 128>}, {pipeline_mode = #tpu.pipeline_mode<synchronous>, transform_indices = @transform_2, window_bounds = array<i64: 1, 128>}, {transform_indices = @transform_3, window_bounds = array<i64: 128, 128>}]} {
    %c0 = arith.constant 0 : index
    %c0_0 = arith.constant 0 : index
    %0 = vector.load %arg1[%c0, %c0_0] : memref<128x8xf32, #tpu.memory_space<vmem>>, vector<128x8xf32>
    %c0_1 = arith.constant 0 : index
    %c0_2 = arith.constant 0 : index
    %1 = vector.load %arg2[%c0_1, %c0_2] : memref<8x128xf32, #tpu.memory_space<vmem>>, vector<8x128xf32>
    %cst = arith.constant dense<0.000000e+00> : vector<128x128xf32>
    %2 = tpu.matmul %0, %1, %cst {dimension_numbers = #tpu.dot_dimension_numbers<[1], [0], [0], [1], [0, 0, 1, 1], [], []>} : vector<128x8xf32>, vector<8x128xf32>, vector<128x128xf32> -> vector<128x128xf32>
    %c0_3 = arith.constant 0 : index
    %c0_4 = arith.constant 0 : index
    %3 = vector.load %arg3[%c0_3, %c0_4] : memref<1x128xf32, #tpu.memory_space<vmem>>, vector<1x128xf32>
    %4 = vector.broadcast %3 : vector<1x128xf32> to vector<128x128xf32>
    %5 = arith.addf %2, %4 : vector<128x128xf32>
    %6 = arith.truncf %5 : vector<128x128xf32> to vector<128x128xbf16>
    %c0_5 = arith.constant 0 : index
    %c0_6 = arith.constant 0 : index
    %7 = vector.load %arg4[%c0_5, %c0_6] : memref<128x128xbf16, #tpu.memory_space<vmem>>, vector<128x128xbf16>
    tpu.vector_store %arg4[%c0_5, %c0_6], %6 {strides = array<i32>} : memref<128x128xbf16, #tpu.memory_space<vmem>>, vector<128x128xbf16>,
    return
  }
  func.func @transform_0(%arg0: i32) -> (i32, i32) {
    %c0_i32 = arith.constant 0 : i32
    %c0_i32_0 = arith.constant 0 : i32
    return %arg0, %c0_i32 : i32, i32
  }
  func.func @transform_1(%arg0: i32) -> (i32, i32) {
    %c0_i32 = arith.constant 0 : i32
    %c0_i32_0 = arith.constant 0 : i32
    %c0_i32_1 = arith.constant 0 : i32
    return %c0_i32, %c0_i32_0 : i32, i32
  }
  func.func @transform_2(%arg0: i32) -> (i32, i32) {
    %c0_i32 = arith.constant 0 : i32
    %c0_i32_0 = arith.constant 0 : i32
    %c0_i32_1 = arith.constant 0 : i32
    return %c0_i32, %c0_i32_0 : i32, i32
  }
  func.func @transform_3(%arg0: i32) -> (i32, i32) {
    %c0_i32 = arith.constant 0 : i32
    %c0_i32_0 = arith.constant 0 : i32
    return %arg0, %c0_i32 : i32, i32
  }
}

</mosaic_0001>

<llo_original>
// kernel: tpu_custom_call.1
$region0: #{tpu_custom_call.1}
  #allocation0 [shape = 'u32[]', space=smem, size = 0x4, offset = 0x4, fixed_abs, tag = 'smem constant byte address 0x4 - core index']
  #allocation1 [shape = 'u32[144,128]{1,0:T(1,128)}', space=vmem, size = 0x12000, scoped, tag = 'internal scratch']
  %s0 = inlined_call_operand.vmem [shape: f32[256,8], index: 0, kind: input, shape index: {}]
  %s1 = inlined_call_operand.vmem [shape: f32[8,128], index: 1, kind: input, shape index: {}]
  %s2 = inlined_call_operand.vmem [shape: f32[1,128], index: 2, kind: input, shape index: {}]
  %s3 = inlined_call_operand.hbm [shape: bf16[256,128], index: 3, kind: output, shape index: {}]
  %s4 = sld [smem:[#allocation0]]
  $region45: #{tpu_custom_call.1} parent=0
    _
  %s6 = ssub.s32 1, %s4
  %s7 = scalar_select 0, %s6, %s4
  $region1: #{tpu_custom_call.1} parent=0
    #allocation2 [shape = 'u8[65536]{0}', space=vmem, size = 0x10000, scoped, tag = 'output window, operand 0']
    #allocation3 [shape = 's32[2]{0}', space=sflag, size = 0x8, scoped, tag = 'scoped memory for tpu_custom_call.1']
    %8 = vsyncpa [#allocation3], 0
    %s9 = scalar_lea.sflag [#allocation3], 1
    %10 = vsyncpa %s9, 0
    loop: start=0, step=1, limit=4
    $region2: #{tpu_custom_call.1} parent=1 // loop_pre_header
      _
    $region3: #{tpu_custom_call.1} parent=1 // loop_header
      %s12 = sphi 0, %s16
      %p13 = scmp.ge.s32.totalorder %s12, 4
      %s22 = sphi 0, %s24
      %s25 = sphi 0, %s22
      %s26 = sphi 0, %s25
      %s42 = sphi 0, %s26
      %s46 = sphi 0, %s46
      %s48 = sphi 0, %s46
      %s49 = sphi 0, %s48
      %s63 = sphi 0, %s49
      %s67 = sphi 0, %s67
      %s69 = sphi 0, %s67
      %s70 = sphi 0, %s69
      %s84 = sphi 0, %s70
      %s90 = sphi 0, %s92
      %s93 = sphi 0, %s90
      %s94 = sphi 0, %s93
      %s110 = sphi 0, %s94
    $region4: #{tpu_custom_call.1} parent=1 // loop_header_branch
      %15 = sbr.rel (%p13) target = $region8
    $region5: #{tpu_custom_call.1} parent=1 // loop_body
      %s17 = ssub.s32 %s12, 1
      %s18 = ssub.s32 %s12, 2
      %s19 = sadd.s32 %s12, 1
      %s20 = ssub.s32 %s12, %s19
      %p21 = scmp.eq.s32.totalorder %s20, 0
      %s23 = sadd.s32 %s22, 1
      %s24 = scalar_select %p21, %s22, %s23
      %p27 = pneg %p21
      %p28 = scmp.eq.s32.totalorder %s12, 1
      %p29 = por %p27, %p28
      %p30 = scmp.ne.s32.totalorder %s22, %s25
      %p31 = scmp.eq.s32.totalorder %s12, 0
      %p32 = por %p30, %p31
      %p33 = scmp.ne.s32.totalorder %s22, %s25
      %p34 = scmp.eq.s32.totalorder %s17, 1
      %p35 = por %p33, %p34
      %p36 = scmp.ne.s32.totalorder %s25, %s26
      %p37 = scmp.eq.s32.totalorder %s17, 0
      %p38 = por %p36, %p37
      %p39 = scmp.ne.s32.totalorder %s25, %s26
      %p40 = scmp.eq.s32.totalorder %s18, 1
      %p41 = por %p39, %p40
      %p43 = scmp.ne.s32.totalorder %s26, %s42
      %p44 = scmp.eq.s32.totalorder %s18, 0
      %p45 = por %p43, %p44
      %s47 = sadd.s32 %s46, 1
      %p50 = scmp.eq.s32.totalorder %s12, 1
      %p51 = scmp.ne.s32.totalorder %s46, %s48
      %p52 = scmp.eq.s32.totalorder %s12, 0
      %p53 = por %p51, %p52
      %p54 = scmp.ne.s32.totalorder %s46, %s48
      %p55 = scmp.eq.s32.totalorder %s17, 1
      %p56 = por %p54, %p55
      %p57 = scmp.ne.s32.totalorder %s48, %s49
      %p58 = scmp.eq.s32.totalorder %s17, 0
      %p59 = por %p57, %p58
      %p60 = scmp.ne.s32.totalorder %s48, %s49
      %p61 = scmp.eq.s32.totalorder %s18, 1
      %p62 = por %p60, %p61
      %p64 = scmp.ne.s32.totalorder %s49, %s63
      %p65 = scmp.eq.s32.totalorder %s18, 0
      %p66 = por %p64, %p65
      %s68 = sadd.s32 %s67, 1
      %p71 = scmp.eq.s32.totalorder %s12, 1
      %p72 = scmp.ne.s32.totalorder %s67, %s69
      %p73 = scmp.eq.s32.totalorder %s12, 0
      %p74 = por %p72, %p73
      %p75 = scmp.ne.s32.totalorder %s67, %s69
      %p76 = scmp.eq.s32.totalorder %s17, 1
      %p77 = por %p75, %p76
      %p78 = scmp.ne.s32.totalorder %s69, %s70
      %p79 = scmp.eq.s32.totalorder %s17, 0
      %p80 = por %p78, %p79
      %p81 = scmp.ne.s32.totalorder %s69, %s70
      %p82 = scmp.eq.s32.totalorder %s18, 1
      %p83 = por %p81, %p82
      %p85 = scmp.ne.s32.totalorder %s70, %s84
      %p86 = scmp.eq.s32.totalorder %s18, 0
      %p87 = por %p85, %p86
      %s88 = ssub.s32 %s12, %s19
      %p89 = scmp.eq.s32.totalorder %s88, 0
      %s91 = sadd.s32 %s90, 1
      %s92 = scalar_select %p89, %s90, %s91
      %p95 = pneg %p89
      %p96 = scmp.eq.s32.totalorder %s12, 1
      %p97 = por %p95, %p96
      %p98 = scmp.ne.s32.totalorder %s90, %s93
      %p99 = scmp.eq.s32.totalorder %s12, 0
      %p100 = por %p98, %p99
      %p101 = scmp.ne.s32.totalorder %s90, %s93
      %p102 = scmp.eq.s32.totalorder %s17, 1
      %p103 = por %p101, %p102
      %p104 = scmp.ne.s32.totalorder %s93, %s94
      %p105 = scmp.eq.s32.totalorder %s17, 0
      %p106 = por %p104, %p105
      %p107 = scmp.ne.s32.totalorder %s93, %s94
      %p108 = scmp.eq.s32.totalorder %s18, 1
      %p109 = por %p107, %p108
      %p111 = scmp.ne.s32.totalorder %s94, %s110
      %p112 = scmp.eq.s32.totalorder %s18, 0
      %p113 = por %p111, %p112
      %p114 = scmp.le.s32.totalorder 1, %s12
      %p115 = scmp.lt.s32.totalorder %s12, 3
      %p116 = pnand %p114, %p115
      %p117 = pneg %p116
      // Predicated region
      $region9: #{tpu_custom_call.1} parent=5 // pred_check
        _
      $region10: #{tpu_custom_call.1} parent=5 // pred_check_branch
        %119 = sbr.rel (%p116) target = $region12
      $region11: #{tpu_custom_call.1} parent=5 // pred_region
        %s120 = ssub.s32 %s12, 1
        // Predicated region
        $region13: #{tpu_custom_call.1} parent=11 // pred_check
          %p121 = pneg %p59
        $region14: #{tpu_custom_call.1} parent=11 // pred_check_branch
          %123 = sbr.rel (%p121) target = $region16
        $region15: #{tpu_custom_call.1} parent=11 // pred_region
          _
        $region16: #{tpu_custom_call.1} parent=11 // pred_fallthru
          _
        // Predicated region
        $region17: #{tpu_custom_call.1} parent=11 // pred_check
          %p124 = pneg %p80
        $region18: #{tpu_custom_call.1} parent=11 // pred_check_branch
          %126 = sbr.rel (%p124) target = $region20
        $region19: #{tpu_custom_call.1} parent=11 // pred_region
          _
        $region20: #{tpu_custom_call.1} parent=11 // pred_fallthru
          _
      $region12: #{tpu_custom_call.1} parent=5 // pred_fallthru
        _
      %p127 = scmp.lt.s32.totalorder %s12, 2
      // Predicated region
      $region21: #{tpu_custom_call.1} parent=5 // pred_check
        %p128 = pneg %p127
      $region22: #{tpu_custom_call.1} parent=5 // pred_check_branch
        %130 = sbr.rel (%p128) target = $region24
      $region23: #{tpu_custom_call.1} parent=5 // pred_region
        // Predicated region
        $region25: #{tpu_custom_call.1} parent=23 // pred_check
          %p131 = pneg %p32
        $region26: #{tpu_custom_call.1} parent=23 // pred_check_branch
          %133 = sbr.rel (%p131) target = $region28
        $region27: #{tpu_custom_call.1} parent=23 // pred_region
          %s134 = smul.u32 16, %s12
          %p135 = scmp.lt.s32.totalorder %s134, 31
          %s136 = scalar_select %p135, %s134, 31
          %s137 = smul.addr %s136, 8
          %s138 = scalar_lea.vmem %s0, %s137
          %s139 = smul.u32 16, %s12
        $region28: #{tpu_custom_call.1} parent=23 // pred_fallthru
          _
      $region24: #{tpu_custom_call.1} parent=5 // pred_fallthru
        _
      %p140 = scmp.le.s32.totalorder 1, %s12
      %p141 = scmp.lt.s32.totalorder %s12, 3
      %p142 = pnand %p140, %p141
      %p143 = pneg %p142
      // Predicated region
      $region29: #{tpu_custom_call.1} parent=5 // pred_check
        _
      $region30: #{tpu_custom_call.1} parent=5 // pred_check_branch
        %145 = sbr.rel (%p142) target = $region32
      $region31: #{tpu_custom_call.1} parent=5 // pred_region
        %s146 = ssub.s32 %s12, 1
        %s147 = smul.u32 16, %s17
        %p148 = scmp.lt.s32.totalorder %s147, 31
        %s149 = scalar_select %p148, %s147, 31
        %s150 = smul.addr %s149, 8
        %s151 = scalar_lea.vmem %s0, %s150
        %p152 = pneg %p38
        %p153 = pneg %p35
        %p154 = pneg %p59
        %p155 = pneg %p56
        %p156 = pneg %p80
        %p157 = pneg %p77
        %p158 = pneg %p106
        %p159 = pneg %p103
        %s160 = sand.u32 %s93, 1
        %s161 = scalar_lea.sflag [#allocation3], %s160
        %s162 = sand.u32 %s93, 1
        %s163 = smul.addr %s162, 64
        %s164 = scalar_lea.vmem [#allocation2], %s163
        %s165 = smul.u32 16, %s17
        %p166 = scmp.lt.s32.totalorder %s165, 31
        %s167 = scalar_select %p166, %s165, 31
        %s168 = smul.addr %s167, 8
        %s169 = scalar_lea.vmem %s0, %s168
        %s170 = smul.u32 16, %s17
        %s171 = smul.u32 16, %s17
        %v172 = vld [vmem:[%s169] sm:$0xff]
        %v173 = vld [vmem:[%s169 + $0x8] sm:$0xff]
        %v174 = vld [vmem:[%s169 + $0x10] sm:$0xff]
        %v175 = vld [vmem:[%s169 + $0x18] sm:$0xff]
        %v176 = vld [vmem:[%s169 + $0x20] sm:$0xff]
        %v177 = vld [vmem:[%s169 + $0x28] sm:$0xff]
        %v178 = vld [vmem:[%s169 + $0x30] sm:$0xff]
        %v179 = vld [vmem:[%s169 + $0x38] sm:$0xff]
        %v180 = vld [vmem:[%s169 + $0x40] sm:$0xff]
        %v181 = vld [vmem:[%s169 + $0x48] sm:$0xff]
        %v182 = vld [vmem:[%s169 + $0x50] sm:$0xff]
        %v183 = vld [vmem:[%s169 + $0x58] sm:$0xff]
        %v184 = vld [vmem:[%s169 + $0x60] sm:$0xff]
        %v185 = vld [vmem:[%s169 + $0x68] sm:$0xff]
        %v186 = vld [vmem:[%s169 + $0x70] sm:$0xff]
        %v187 = vld [vmem:[%s169 + $0x78] sm:$0xff]
        %v188 = vld [vmem:[%s1] sm:$0xff]
        %v189 = vld [vmem:[%s2] sm:$0x1]
        %v191 = vlaneseq
        %v192 = vshrl.u32 %v191, 7
        %v193 = vsub.s32 0, %v192
        %v194 = vrot.slane %v189, %v193
        %vm196 = vcmask 64512
        %v198 = vsel %vm196, %v172, 0
        %v201 = vsel %vm196, %v173, 0
        %v204 = vsel %vm196, %v174, 0
        %v207 = vsel %vm196, %v175, 0
        %v210 = vsel %vm196, %v176, 0
        %v213 = vsel %vm196, %v177, 0
        %v216 = vsel %vm196, %v178, 0
        %v219 = vsel %vm196, %v179, 0
        %v222 = vsel %vm196, %v180, 0
        %v225 = vsel %vm196, %v181, 0
        %v228 = vsel %vm196, %v182, 0
        %v231 = vsel %vm196, %v183, 0
        %v234 = vsel %vm196, %v184, 0
        %v237 = vsel %vm196, %v185, 0
        %v240 = vsel %vm196, %v186, 0
        %v243 = vsel %vm196, %v187, 0
        %245 = vmatprep.subr.mxu0 0.0
        %246 = vmatpush1.msra.mxu0 %v188
        %247 = vmatprep.subr.mxu0 0.0
        %248 = vmatpush1.msra.mxu0 0.0
        %249 = vmatprep.subr.mxu0 0.0
        %250 = vmatpush1.msra.mxu0 0.0
        %251 = vmatprep.subr.mxu0 0.0
        %252 = vmatpush1.msra.mxu0 0.0
        %253 = vmatprep.subr.mxu0 0.0
        %254 = vmatpush1.msra.mxu0 0.0
        %255 = vmatprep.subr.mxu0 0.0
        %256 = vmatpush1.msra.mxu0 0.0
        %257 = vmatprep.subr.mxu0 0.0
        %258 = vmatpush1.msra.mxu0 0.0
        %259 = vmatprep.subr.mxu0 0.0
        %260 = vmatpush1.msra.mxu0 0.0
        %261 = vmatprep.subr.mxu0 0.0
        %262 = vmatpush1.msra.mxu0 0.0
        %263 = vmatprep.subr.mxu0 0.0
        %264 = vmatpush1.msra.mxu0 0.0
        %265 = vmatprep.subr.mxu0 0.0
        %266 = vmatpush1.msra.mxu0 0.0
        %267 = vmatprep.subr.mxu0 0.0
        %268 = vmatpush1.msra.mxu0 0.0
        %269 = vmatprep.subr.mxu0 0.0
        %270 = vmatpush1.msra.mxu0 0.0
        %271 = vmatprep.subr.mxu0 0.0
        %272 = vmatpush1.msra.mxu0 0.0
        %273 = vmatprep.subr.mxu0 0.0
        %274 = vmatpush1.msra.mxu0 0.0
        %275 = vmatprep.subr.mxu0 0.0
        %276 = vmatpush1.msra.mxu0 0.0
        %277 = vmatprep.subr.mxu0 0.0
        %278 = vmatpush1.msra.mxu0 0.0
        %279 = vmatprep.subr.mxu0 0.0
        %280 = vmatpush1.msra.mxu0 0.0
        %281 = vmatprep.subr.mxu0 0.0
        %282 = vmatpush1.msra.mxu0 0.0
        %283 = vmatprep.subr.mxu0 0.0
        %284 = vmatpush1.msra.mxu0 0.0
        %285 = vmatprep.subr.mxu0 0.0
        %286 = vmatpush1.msra.mxu0 0.0
        %287 = vmatprep.subr.mxu0 0.0
        %288 = vmatpush1.msra.mxu0 0.0
        %289 = vmatprep.subr.mxu0 0.0
        %290 = vmatpush1.msra.mxu0 0.0
        %291 = vmatprep.subr.mxu0 0.0
        %292 = vmatpush1.msra.mxu0 0.0
        %293 = vmatprep.subr.mxu0 0.0
        %294 = vmatpush1.msra.mxu0 0.0
        %295 = vmatprep.subr.mxu0 0.0
        %296 = vmatpush1.msra.mxu0 0.0
        %297 = vmatprep.subr.mxu0 0.0
        %298 = vmatpush1.msra.mxu0 0.0
        %299 = vmatprep.subr.mxu0 0.0
        %300 = vmatpush1.msra.mxu0 0.0
        %301 = vmatprep.subr.mxu0 0.0
        %302 = vmatpush1.msra.mxu0 0.0
        %303 = vmatprep.subr.mxu0 0.0
        %304 = vmatpush1.msra.mxu0 0.0
        %305 = vmatprep.subr.mxu0 0.0
        %306 = vmatpush1.msra.mxu0 0.0
        %307 = vmatprep.subr.mxu0 0.0
        %308 = vmatpush1.msra.mxu0 0.0
        %309 = vmatprep.mubr.f32.mxu0 0.0
        %310 = vmatmul.mubr.f32.gmra.mrb[0].mxu0 %v198
        %v311 = vpop.f32.mrb[0].mxu0
        %v312 = vadd.f32 %v194, %v311
        %v313 = vpop.f32.mrb[0].mxu0
        %314 = vmatprep.mubr.f32.mxu0 0.0
        %315 = vmatmul.mubr.f32.gmra.mrb[0].mxu0 %v201
        %v316 = vpop.f32.mrb[0].mxu0
        %v317 = vadd.f32 %v194, %v316
        %v318 = vpop.f32.mrb[0].mxu0
        %319 = vmatprep.mubr.f32.mxu0 0.0
        %320 = vmatmul.mubr.f32.gmra.mrb[0].mxu0 %v204
        %v321 = vpop.f32.mrb[0].mxu0
        %v322 = vadd.f32 %v194, %v321
        %v323 = vpop.f32.mrb[0].mxu0
        %324 = vmatprep.mubr.f32.mxu0 0.0
        %325 = vmatmul.mubr.f32.gmra.mrb[0].mxu0 %v207
        %v326 = vpop.f32.mrb[0].mxu0
        %v327 = vadd.f32 %v194, %v326
        %v328 = vpop.f32.mrb[0].mxu0
        %329 = vmatprep.mubr.f32.mxu0 0.0
        %330 = vmatmul.mubr.f32.gmra.mrb[0].mxu0 %v210
        %v331 = vpop.f32.mrb[0].mxu0
        %v332 = vadd.f32 %v194, %v331
        %v333 = vpop.f32.mrb[0].mxu0
        %334 = vmatprep.mubr.f32.mxu0 0.0
        %335 = vmatmul.mubr.f32.gmra.mrb[0].mxu0 %v213
        %v336 = vpop.f32.mrb[0].mxu0
        %v337 = vadd.f32 %v194, %v336
        %v338 = vpop.f32.mrb[0].mxu0
        %339 = vmatprep.mubr.f32.mxu0 0.0
        %340 = vmatmul.mubr.f32.gmra.mrb[0].mxu0 %v216
        %v341 = vpop.f32.mrb[0].mxu0
        %v342 = vadd.f32 %v194, %v341
        %v343 = vpop.f32.mrb[0].mxu0
        %344 = vmatprep.mubr.f32.mxu0 0.0
        %345 = vmatmul.mubr.f32.gmra.mrb[0].mxu0 %v219
        %v346 = vpop.f32.mrb[0].mxu0
        %v347 = vadd.f32 %v194, %v346
        %v348 = vpop.f32.mrb[0].mxu0
        %349 = vmatprep.mubr.f32.mxu0 0.0
        %350 = vmatmul.mubr.f32.gmra.mrb[0].mxu0 %v222
        %v351 = vpop.f32.mrb[0].mxu0
        %v352 = vadd.f32 %v194, %v351
        %v353 = vpop.f32.mrb[0].mxu0
        %354 = vmatprep.mubr.f32.mxu0 0.0
        %355 = vmatmul.mubr.f32.gmra.mrb[0].mxu0 %v225
        %v356 = vpop.f32.mrb[0].mxu0
        %v357 = vadd.f32 %v194, %v356
        %v358 = vpop.f32.mrb[0].mxu0
        %359 = vmatprep.mubr.f32.mxu0 0.0
        %360 = vmatmul.mubr.f32.gmra.mrb[0].mxu0 %v228
        %v361 = vpop.f32.mrb[0].mxu0
        %v362 = vadd.f32 %v194, %v361
        %v363 = vpop.f32.mrb[0].mxu0
        %364 = vmatprep.mubr.f32.mxu0 0.0
        %365 = vmatmul.mubr.f32.gmra.mrb[0].mxu0 %v231
        %v366 = vpop.f32.mrb[0].mxu0
        %v367 = vadd.f32 %v194, %v366
        %v368 = vpop.f32.mrb[0].mxu0
        %369 = vmatprep.mubr.f32.mxu0 0.0
        %370 = vmatmul.mubr.f32.gmra.mrb[0].mxu0 %v234
        %v371 = vpop.f32.mrb[0].mxu0
        %v372 = vadd.f32 %v194, %v371
        %v373 = vpop.f32.mrb[0].mxu0
        %374 = vmatprep.mubr.f32.mxu0 0.0
        %375 = vmatmul.mubr.f32.gmra.mrb[0].mxu0 %v237
        %v376 = vpop.f32.mrb[0].mxu0
        %v377 = vadd.f32 %v194, %v376
        %v378 = vpop.f32.mrb[0].mxu0
        %379 = vmatprep.mubr.f32.mxu0 0.0
        %380 = vmatmul.mubr.f32.gmra.mrb[0].mxu0 %v240
        %v381 = vpop.f32.mrb[0].mxu0
        %v382 = vadd.f32 %v194, %v381
        %v383 = vpop.f32.mrb[0].mxu0
        %384 = vmatprep.mubr.f32.mxu0 0.0
        %385 = vmatmul.mubr.f32.gmra.mrb[0].mxu0 %v243
        %v386 = vpop.f32.mrb[0].mxu0
        %v387 = vadd.f32 %v194, %v386
        %v388 = vpop.f32.mrb[0].mxu0
        %389 = vdwg.mxu0
        %v390 = vpack.c.bf16 %v317, %v312
        %v391 = vpack.c.bf16 %v327, %v322
        %v392 = vpack.c.bf16 %v337, %v332
        %v393 = vpack.c.bf16 %v347, %v342
        %v394 = vpack.c.bf16 %v357, %v352
        %v395 = vpack.c.bf16 %v367, %v362
        %v396 = vpack.c.bf16 %v377, %v372
        %v397 = vpack.c.bf16 %v387, %v382
        %v406 = vunpack.c.l.b16 %v390
        %v407 = vunpack.c.h.b16 %v390
        %v408 = vunpack.c.l.b16 %v391
        %v409 = vunpack.c.h.b16 %v391
        %v410 = vunpack.c.l.b16 %v392
        %v411 = vunpack.c.h.b16 %v392
        %v412 = vunpack.c.l.b16 %v393
        %v413 = vunpack.c.h.b16 %v393
        %v414 = vunpack.c.l.b16 %v394
        %v415 = vunpack.c.h.b16 %v394
        %v416 = vunpack.c.l.b16 %v395
        %v417 = vunpack.c.h.b16 %v395
        %v418 = vunpack.c.l.b16 %v396
        %v419 = vunpack.c.h.b16 %v396
        %v420 = vunpack.c.l.b16 %v397
        %v421 = vunpack.c.h.b16 %v397
        %v422 = vpack.c.b16 %v406, %v406
        %v423 = vpack.c.b16 %v407, %v407
        %v424 = vpack.c.b16 %v408, %v408
        %v425 = vpack.c.b16 %v409, %v409
        %v426 = vpack.c.b16 %v410, %v410
        %v427 = vpack.c.b16 %v411, %v411
        %v428 = vpack.c.b16 %v412, %v412
        %v429 = vpack.c.b16 %v413, %v413
        %v430 = vpack.c.b16 %v414, %v414
        %v431 = vpack.c.b16 %v415, %v415
        %v432 = vpack.c.b16 %v416, %v416
        %v433 = vpack.c.b16 %v417, %v417
        %v434 = vpack.c.b16 %v418, %v418
        %v435 = vpack.c.b16 %v419, %v419
        %v436 = vpack.c.b16 %v420, %v420
        %v437 = vpack.c.b16 %v421, %v421
        %454 = vst [vmem:[%s164] sm:$0xf] %v422
        %455 = vst [vmem:[%s164 + $0x4] sm:$0xf] %v423
        %456 = vst [vmem:[%s164 + $0x8] sm:$0xf] %v424
        %457 = vst [vmem:[%s164 + $0xc] sm:$0xf] %v425
        %458 = vst [vmem:[%s164 + $0x10] sm:$0xf] %v426
        %459 = vst [vmem:[%s164 + $0x14] sm:$0xf] %v427
        %460 = vst [vmem:[%s164 + $0x18] sm:$0xf] %v428
        %461 = vst [vmem:[%s164 + $0x1c] sm:$0xf] %v429
        %462 = vst [vmem:[%s164 + $0x20] sm:$0xf] %v430
        %463 = vst [vmem:[%s164 + $0x24] sm:$0xf] %v431
        %464 = vst [vmem:[%s164 + $0x28] sm:$0xf] %v432
        %465 = vst [vmem:[%s164 + $0x2c] sm:$0xf] %v433
        %466 = vst [vmem:[%s164 + $0x30] sm:$0xf] %v434
        %467 = vst [vmem:[%s164 + $0x34] sm:$0xf] %v435
        %468 = vst [vmem:[%s164 + $0x38] sm:$0xf] %v436
        %469 = vst [vmem:[%s164 + $0x3c] sm:$0xf] %v437
        %s470 = sand.u32 %s93, 1
        %s471 = scalar_lea.sflag [#allocation3], %s470
        %s472 = sand.u32 %s93, 1
        %s473 = smul.addr %s472, 64
        %s474 = scalar_lea.vmem [#allocation2], %s473
        // Predicated region
        $region33: #{tpu_custom_call.1} parent=31 // pred_check
          %p475 = pneg %p103
        $region34: #{tpu_custom_call.1} parent=31 // pred_check_branch
          %477 = sbr.rel (%p475) target = $region36
        $region35: #{tpu_custom_call.1} parent=31 // pred_region
          %s478 = smul.u32 16, %s17
          %s480 = ssub.s32 1024, 1024
          %481 = vsyncadd %s471, %s480
          %s482 = smul.addr %s478, 64
          %s483 = scalar_lea.hbm %s3, %s482
          %s484 = sshll.u32 %s474, 4
          %s485 = int_to_ptr.vmem [resolvable:$true] %s484
          %490 = dma.vmem_to_hbm [thread:$0]  %s485, 1024, %s483, %s471, 64, 64, 4
        $region36: #{tpu_custom_call.1} parent=31 // pred_fallthru
          _
      $region32: #{tpu_custom_call.1} parent=5 // pred_fallthru
        _
      %p491 = scmp.le.s32.totalorder 2, %s12
      // Predicated region
      $region37: #{tpu_custom_call.1} parent=5 // pred_check
        %p492 = pneg %p491
      $region38: #{tpu_custom_call.1} parent=5 // pred_check_branch
        %494 = sbr.rel (%p492) target = $region40
      $region39: #{tpu_custom_call.1} parent=5 // pred_region
        %s495 = ssub.s32 %s12, 2
        // Predicated region
        $region41: #{tpu_custom_call.1} parent=39 // pred_check
          %p496 = pneg %p109
        $region42: #{tpu_custom_call.1} parent=39 // pred_check_branch
          %498 = sbr.rel (%p496) target = $region44
        $region43: #{tpu_custom_call.1} parent=39 // pred_region
          %s499 = sand.u32 %s94, 1
          %s500 = scalar_lea.sflag [#allocation3], %s499
          %s501 = sand.u32 %s94, 1
          %s502 = smul.addr %s501, 64
          %s503 = scalar_lea.vmem [#allocation2], %s502
          %504 = dma.done %s500, 1024
        $region44: #{tpu_custom_call.1} parent=39 // pred_fallthru
          _
      $region40: #{tpu_custom_call.1} parent=5 // pred_fallthru
        _
    $region6: #{tpu_custom_call.1} parent=1 // loop_footer
      %s16 = sadd.s32 1, %s12
    $region7: #{tpu_custom_call.1} parent=1 // loop_footer_branch
      %11 = sbr.rel target = $region3
    $region8: #{tpu_custom_call.1} parent=1 // loop_exit
      _
    %505 = vsyncpa [#allocation3], 1
    %s506 = scalar_lea.sflag [#allocation3], 1
    %507 = vsyncpa %s506, 1

</llo_original>
